<compile_context>
chip_gen: v6e
topology: v6e:2x2x1
jax: 0.10.0
libtpu: 0.0.40
codegen_flags: <defaults>
</compile_context>

<pallas_src>
import functools

import jax
import jax.numpy as jnp
from jax.experimental import pallas as pl
from jax.experimental.pallas import tpu as pltpu

_NEG_BIG = -1e30      # finite "-inf" for padded vocab columns (avoids inf-inf NaNs)
_ROW_ALIGN = 16       # bf16-friendly sublane alignment for row tiles
_MAX_TM = 512         # beyond this, weight re-stream savings are negligible
_DEFAULT_TV = 1024    # fat vocab tiles amortize the ~0.35us per-grid-step cost


def _round_up(x, m):
    return (x + m - 1) // m * m


def _usable_vmem_bytes():
    """~85% of per-core VMEM (headroom for compiler scratch / semaphores).

    v5e/v6e: 128 MiB -> ~109 MiB usable; v7x: 64 MiB/TC -> ~54 MiB usable.
    """
    cap = 64 * 1024 * 1024  # conservative fallback (v7x per-TensorCore)
    try:
        cap = int(pltpu.get_tpu_info().vmem_capacity_bytes)
    except Exception:
        pass
    return int(cap * 0.85)


def _auto_row_tile(M, H, V_pad, tv, out_bytes, usable_vmem):
    """Largest row tile whose double-buffered working set fits usable VMEM."""
    # TODO(synk): on v7x (2 TCs/chip), for small M prefer tm <= ceil(M/16/2)*16
    # so the "parallel" row axis splits across both cores; there is no portable
    # core-count query here, so we only size against VMEM.
    fixed = 2 * H * tv * 2 + 2 * tv * 4 + (2 << 20)   # w/bias buffers + slack
    per_row = 2 * H * 2 + 2 * V_pad * out_bytes + 8   # x bufs + out bufs + m/l
    budget_rows = max((usable_vmem - fixed) // per_row, _ROW_ALIGN)
    tm = int(min(budget_rows, _MAX_TM, _round_up(M, _ROW_ALIGN)))
    if tm >= 128:
        tm = tm // 128 * 128                          # MXU-friendly
    else:
        tm = max(_ROW_ALIGN, tm // _ROW_ALIGN * _ROW_ALIGN)
    return tm


def mlm_head_kernel(x_ref, w_ref, b_ref, o_ref, m_ref, l_ref):
    """One (row-tile, vocab-tile) grid step of Linear + online log-softmax.

    x_ref: (tm, H) bf16    w_ref: (H, tv) bf16    b_ref: (1, tv) f32
    o_ref: (tm, V_pad) out_dtype  -- resident across the vocab grid axis
    m_ref, l_ref: (tm, 1) f32 running max / rescaled exp-sum scratch.
    """
    k = pl.program_id(1)
    tv = w_ref.shape[1]

    @pl.when(k == 0)
    def _init():
        m_ref[...] = jnp.full(m_ref.shape, -jnp.inf, dtype=m_ref.dtype)
        l_ref[...] = jnp.zeros(l_ref.shape, dtype=l_ref.dtype)

    # MXU matmul (bf16 inputs, f32 accumulation), bias add in f32.
    logits = jnp.dot(x_ref[...], w_ref[...],
                     preferred_element_type=jnp.float32) + b_ref[...]

    # Online log-softmax state update (all f32).
    m_prev = m_ref[...]
    m_new = jnp.maximum(m_prev, jnp.max(logits, axis=-1, keepdims=True))
    l_ref[...] = (jnp.exp(m_prev - m_new) * l_ref[...]
                  + jnp.sum(jnp.exp(logits - m_new), axis=-1, keepdims=True))
    m_ref[...] = m_new

    # Stash raw logits for this vocab tile into the resident output block.
    start = pl.multiple_of(k * tv, 128)
    o_ref[:, pl.ds(start, tv)] = logits.astype(o_ref.dtype)

    # After the last vocab tile, normalize the whole resident row block once
    # (read-modify-write pass is on the narrow out_dtype block -> half the vst
    # traffic vs f32).
    @pl.when(k == pl.num_programs(1) - 1)
    def _finalize():
        lse = m_ref[...] + jnp.log(l_ref[...])
        o_ref[...] = (o_ref[...].astype(jnp.float32) - lse).astype(o_ref.dtype)


def prepare_mlm_params(weight_vh, bias, *, tv=_DEFAULT_TV):
    """One-time parameter prep (hoisted out of the per-call path).

    torch Linear weight (V, H) -> (H, V_pad) bf16; bias -> (1, V_pad) f32 with
    padded columns set to a large negative value so they never win the max and
    contribute 0 to the softmax denominator. Returns (w, b, vocab_size, tv).
    """
    V, H = weight_vh.shape
    tv_eff = _round_up(min(tv, _round_up(V, 128)), 128)
    V_pad = _round_up(V, tv_eff)

    w = weight_vh.T.astype(jnp.bfloat16)                 # (H, V)
    b = bias.astype(jnp.float32).reshape(1, V)
    if V_pad != V:
        w = jnp.pad(w, ((0, 0), (0, V_pad - V)))
        b = jnp.pad(b, ((0, 0), (0, V_pad - V)), constant_values=_NEG_BIG)
    return w, b, V, tv_eff


@functools.partial(jax.jit,
                   static_argnames=("tm", "tv", "out_dtype", "usable_vmem"))
def mlm_head_padded(x, w_hv, b_row, *, tm, tv, out_dtype, usable_vmem):
    """x: (..., H); w_hv: (H, V_pad) bf16; b_row: (1, V_pad) f32.

    Returns the PADDED (M_pad, V_pad) log-softmax array in `out_dtype`.
    Production consumers (loss / gather) should use this directly and mask
    padded rows/columns downstream — no slice copy of the big output.
    """
    *lead, H = x.shape
    Hw, V_pad = w_hv.shape
    assert Hw == H
    assert tv % 128 == 0, "vocab tile must be lane-aligned (multiple of 128)"
    assert V_pad % tv == 0, "vocab padding must match the vocab tile"

    M = 1
    for d in lead:
        M *= d

    # Row tile: requested size, clipped to the data, sublane-aligned.
    tm_eff = max(_ROW_ALIGN,
                 min(_round_up(tm, _ROW_ALIGN), _round_up(M, _ROW_ALIGN)))
    M_pad = _round_up(M, tm_eff)

    x2 = x.reshape(M, H).astype(jnp.bfloat16)
    if M_pad != M:
        x2 = jnp.pad(x2, ((0, M_pad - M), (0, 0)))

    out_bytes = jnp.dtype(out_dtype).itemsize
    grid = (M_pad // tm_eff, V_pad // tv)
    n_row_tiles = grid[0]

    # VMEM accounting (each term already includes its buffer count).
    vmem_bytes = (2 * tm_eff * H * 2               # x tile (bf16, 2 buffers)
                  + 2 * H * tv * 2                 # weight tile (bf16, 2 buffers)
                  + 2 * tv * 4                     # bias tile (f32, 2 buffers)
                  + 2 * tm_eff * V_pad * out_bytes  # resident output (2 buffers)
                  + 2 * tm_eff * 4 * 2)            # m / l scratch
    vmem_limit = int(min(max(vmem_bytes + (2 << 20), 8 << 20), usable_vmem))

    # HBM traffic: x once, weight/bias re-streamed once per row tile, output at
    # its real dtype.
    cost = pl.CostEstimate(
        flops=2 * M_pad * H * V_pad + 6 * M_pad * V_pad,
        transcendentals=M_pad * V_pad,
        bytes_accessed=(x2.size * 2
                        + n_row_tiles * (w_hv.size * 2 + b_row.size * 4)
                        + M_pad * V_pad * out_bytes),
    )

    out = pl.pallas_call(
        mlm_head_kernel,
        out_shape=jax.ShapeDtypeStruct((M_pad, V_pad), out_dtype),
        grid_spec=pltpu.PrefetchScalarGridSpec(
            num_scalar_prefetch=0,
            grid=grid,
            in_specs=[
                pl.BlockSpec((tm_eff, H), lambda i, k: (i, 0)),   # x row tile
                pl.BlockSpec((H, tv), lambda i, k: (0, k)),       # weight tile
                pl.BlockSpec((1, tv), lambda i, k: (0, k)),       # bias tile
            ],
            out_specs=pl.BlockSpec((tm_eff, V_pad), lambda i, k: (i, 0)),
            scratch_shapes=[pltpu.VMEM((tm_eff, 1), jnp.float32),
                            pltpu.VMEM((tm_eff, 1), jnp.float32)],
        ),
        compiler_params=pltpu.CompilerParams(
            dimension_semantics=("parallel", "arbitrary"),
            vmem_limit_bytes=vmem_limit),
        cost_estimate=cost,
    )(x2, w_hv, b_row)
    return out


def masked_language_model(x, w_hv, b_row, *, vocab_size, tv, tm=None,
                          out_dtype=jnp.bfloat16):
    """PyTorch-shaped convenience wrapper: (B, S, H) -> (B, S, vocab) log-probs.

    NOTE: the un-padding slice below materializes a copy at large vocab; prefer
    mlm_head_padded() + downstream masking in production pipelines.
    """
    B, S, H = x.shape
    _, V_pad = w_hv.shape
    out_bytes = jnp.dtype(out_dtype).itemsize
    usable_vmem = _usable_vmem_bytes()
    if tm is None:
        tm = _auto_row_tile(B * S, H, V_pad, tv, out_bytes, usable_vmem)
    out = mlm_head_padded(x, w_hv, b_row, tm=tm, tv=tv,
                          out_dtype=out_dtype, usable_vmem=usable_vmem)
    M = B * S
    return out[:M, :vocab_size].reshape(B, S, vocab_size)


def _ref(x, weight_vh, bias):
    logits = jnp.einsum("bsh,vh->bsv", x, weight_vh) + bias
    return jax.nn.log_softmax(logits, axis=-1)


if __name__ == "__main__":
    # Small shapes; non-128-multiple vocab + small vocab tile exercise the
    # padding + multi-vocab-tile online log-softmax path.
    B, S, H, V = 2, 8, 32, 300

    key = jax.random.PRNGKey(0)
    kx, kw, kb = jax.random.split(key, 3)

    x = jax.random.normal(kx, (B, S, H), dtype=jnp.float32)
    # deterministic "Linear(hidden, vocab_size)" params (torch layout: (V, H))
    weight = jax.random.normal(kw, (V, H), dtype=jnp.float32) * 0.05
    bias = jax.random.normal(kb, (V,), dtype=jnp.float32) * 0.01

    # One-time param prep (transpose + bf16 cast + vocab padding), then call.
    w_hv, b_row, vocab, tv = prepare_mlm_params(weight, bias, tv=128)
    out = masked_language_model(x, w_hv, b_row, vocab_size=vocab, tv=tv)
    out = jax.block_until_ready(out)

    ref = _ref(x, weight, bias)
    assert out.shape == (B, S, V)
    out_f32 = out.astype(jnp.float32)
    # bf16 matmul inputs + bf16 output with f32 accumulation -> loosened tol.
    assert jnp.allclose(out_f32, ref, atol=3e-2, rtol=3e-2), \
        float(jnp.max(jnp.abs(out_f32 - ref)))
    # log-softmax rows must sum to ~1 in prob space (bf16 output -> looser tol)
    assert jnp.allclose(jnp.sum(jnp.exp(out_f32), axis=-1), 1.0, atol=1e-2)

    print("KERNEL_OK")
</pallas_src>

<mosaic_0001>
module attributes {stable_mosaic.version = 11 : i64} {
  func.func @mlm_head_kernel(%arg0: i32, %arg1: i32, %arg2: memref<16x32xbf16, #tpu.memory_space<vmem>>, %arg3: memref<32x128xbf16, #tpu.memory_space<vmem>>, %arg4: memref<1x128xf32, #tpu.memory_space<vmem>>, %arg5: memref<16x384xbf16, #tpu.memory_space<vmem>>, %arg6: memref<16x1xf32, #tpu.memory_space<vmem>>, %arg7: memref<16x1xf32, #tpu.memory_space<vmem>>) attributes {dimension_semantics = [#tpu.dimension_semantics<parallel>, #tpu.dimension_semantics<arbitrary>], iteration_bounds = array<i64: 1, 3>, scalar_prefetch = 0 : i64, scratch_operands = 2 : i64, tpu.core_type = #tpu.core_type<tc>, window_params = [{transform_indices = @transform_0, window_bounds = array<i64: 16, 32>}, {transform_indices = @transform_1, window_bounds = array<i64: 32, 128>}, {transform_indices = @transform_2, window_bounds = array<i64: 1, 128>}, {transform_indices = @transform_3, window_bounds = array<i64: 16, 384>}]} {
    %c0_i32 = arith.constant 0 : i32
    %0 = arith.cmpi eq, %arg1, %c0_i32 : i32
    %1 = arith.extui %0 : i1 to i32
    %c0_i32_0 = arith.constant 0 : i32
    %2 = arith.cmpi ne, %1, %c0_i32_0 : i32
    scf.if %2 {
      %cst_18 = arith.constant 0xFF800000 : f32
      %33 = vector.broadcast %cst_18 : f32 to vector<16x1xf32>
      %c0_19 = arith.constant 0 : index
      %c0_20 = arith.constant 0 : index
      %34 = vector.load %arg6[%c0_19, %c0_20] : memref<16x1xf32, #tpu.memory_space<vmem>>, vector<16x1xf32>
      tpu.vector_store %arg6[%c0_19, %c0_20], %33 {strides = array<i32>} : memref<16x1xf32, #tpu.memory_space<vmem>>, vector<16x1xf32>,
      %cst_21 = arith.constant 0.000000e+00 : f32
      %35 = vector.broadcast %cst_21 : f32 to vector<16x1xf32>
      %c0_22 = arith.constant 0 : index
      %c0_23 = arith.constant 0 : index
      %36 = vector.load %arg7[%c0_22, %c0_23] : memref<16x1xf32, #tpu.memory_space<vmem>>, vector<16x1xf32>
      tpu.vector_store %arg7[%c0_22, %c0_23], %35 {strides = array<i32>} : memref<16x1xf32, #tpu.memory_space<vmem>>, vector<16x1xf32>,
    } else {
    }
    %c0 = arith.constant 0 : index
    %c0_1 = arith.constant 0 : index
    %3 = vector.load %arg2[%c0, %c0_1] : memref<16x32xbf16, #tpu.memory_space<vmem>>, vector<16x32xbf16>
    %c0_2 = arith.constant 0 : index
    %c0_3 = arith.constant 0 : index
    %4 = vector.load %arg3[%c0_2, %c0_3] : memref<32x128xbf16, #tpu.memory_space<vmem>>, vector<32x128xbf16>
    %cst = arith.constant dense<0.000000e+00> : vector<16x128xf32>
    %5 = tpu.matmul %3, %4, %cst {dimension_numbers = #tpu.dot_dimension_numbers<[1], [0], [0], [1], [0, 0, 1, 1], [], []>} : vector<16x32xbf16>, vector<32x128xbf16>, vector<16x128xf32> -> vector<16x128xf32>
    %c0_4 = arith.constant 0 : index
    %c0_5 = arith.constant 0 : index
    %6 = vector.load %arg4[%c0_4, %c0_5] : memref<1x128xf32, #tpu.memory_space<vmem>>, vector<1x128xf32>
    %7 = vector.broadcast %6 : vector<1x128xf32> to vector<16x128xf32>
    %8 = arith.addf %5, %7 : vector<16x128xf32>
    %c0_6 = arith.constant 0 : index
    %c0_7 = arith.constant 0 : index
    %9 = vector.load %arg6[%c0_6, %c0_7] : memref<16x1xf32, #tpu.memory_space<vmem>>, vector<16x1xf32>
    %cst_8 = arith.constant dense<0xFF800000> : vector<16xf32>
    %10 = vector.multi_reduction <maximumf>, %8, %cst_8 [1] : vector<16x128xf32> to vector<16xf32>
    %11 = vector.shape_cast %10 : vector<16xf32> to vector<16x1xf32>
    %12 = arith.maximumf %9, %11 : vector<16x1xf32>
    %13 = arith.subf %9, %12 : vector<16x1xf32>
    %14 = math.exp %13 : vector<16x1xf32>
    %c0_9 = arith.constant 0 : index
    %c0_10 = arith.constant 0 : index
    %15 = vector.load %arg7[%c0_9, %c0_10] : memref<16x1xf32, #tpu.memory_space<vmem>>, vector<16x1xf32>
    %16 = arith.mulf %14, %15 : vector<16x1xf32>
    %17 = vector.broadcast %12 : vector<16x1xf32> to vector<16x128xf32>
    %18 = arith.subf %8, %17 : vector<16x128xf32>
    %19 = math.exp %18 : vector<16x128xf32>
    %cst_11 = arith.constant dense<0.000000e+00> : vector<16xf32>
    %20 = vector.multi_reduction <add>, %19, %cst_11 [1] : vector<16x128xf32> to vector<16xf32>
    %21 = vector.shape_cast %20 : vector<16xf32> to vector<16x1xf32>
    %22 = arith.addf %16, %21 : vector<16x1xf32>
    %c0_12 = arith.constant 0 : index
    %c0_13 = arith.constant 0 : index
    %23 = vector.load %arg7[%c0_12, %c0_13] : memref<16x1xf32, #tpu.memory_space<vmem>>, vector<16x1xf32>
    tpu.vector_store %arg7[%c0_12, %c0_13], %22 {strides = array<i32>} : memref<16x1xf32, #tpu.memory_space<vmem>>, vector<16x1xf32>,
    %c0_14 = arith.constant 0 : index
    %c0_15 = arith.constant 0 : index
    %24 = vector.load %arg6[%c0_14, %c0_15] : memref<16x1xf32, #tpu.memory_space<vmem>>, vector<16x1xf32>
    tpu.vector_store %arg6[%c0_14, %c0_15], %12 {strides = array<i32>} : memref<16x1xf32, #tpu.memory_space<vmem>>, vector<16x1xf32>,
    %c128_i32 = arith.constant 128 : i32
    %25 = arith.muli %arg1, %c128_i32 : i32
    %26 = tpu.assume_multiple %25, 128 : i32
    %27 = arith.truncf %8 : vector<16x128xf32> to vector<16x128xbf16>
    %c0_16 = arith.constant 0 : index
    %28 = arith.index_cast %26 : i32 to index
    %29 = vector.load %arg5[%c0_16, %28] : memref<16x384xbf16, #tpu.memory_space<vmem>>, vector<16x128xbf16>
    tpu.vector_store %arg5[%c0_16, %28], %27 {strides = array<i32>} : memref<16x384xbf16, #tpu.memory_space<vmem>>, vector<16x128xbf16>,
    %c2_i32 = arith.constant 2 : i32
    %30 = arith.cmpi eq, %arg1, %c2_i32 : i32
    %31 = arith.extui %30 : i1 to i32
    %c0_i32_17 = arith.constant 0 : i32
    %32 = arith.cmpi ne, %31, %c0_i32_17 : i32
    scf.if %32 {
      %c0_18 = arith.constant 0 : index
      %c0_19 = arith.constant 0 : index
      %33 = vector.load %arg6[%c0_18, %c0_19] : memref<16x1xf32, #tpu.memory_space<vmem>>, vector<16x1xf32>
      %c0_20 = arith.constant 0 : index
      %c0_21 = arith.constant 0 : index
      %34 = vector.load %arg7[%c0_20, %c0_21] : memref<16x1xf32, #tpu.memory_space<vmem>>, vector<16x1xf32>
      %35 = math.log %34 : vector<16x1xf32>
      %36 = arith.addf %33, %35 : vector<16x1xf32>
      %c0_22 = arith.constant 0 : index
      %c0_23 = arith.constant 0 : index
      %37 = vector.load %arg5[%c0_22, %c0_23] : memref<16x384xbf16, #tpu.memory_space<vmem>>, vector<16x384xbf16>
      %38 = arith.extf %37 : vector<16x384xbf16> to vector<16x384xf32>
      %39 = vector.broadcast %36 : vector<16x1xf32> to vector<16x384xf32>
      %40 = arith.subf %38, %39 : vector<16x384xf32>
      %41 = arith.truncf %40 : vector<16x384xf32> to vector<16x384xbf16>
      %c0_24 = arith.constant 0 : index
      %c0_25 = arith.constant 0 : index
      %42 = vector.load %arg5[%c0_24, %c0_25] : memref<16x384xbf16, #tpu.memory_space<vmem>>, vector<16x384xbf16>
      tpu.vector_store %arg5[%c0_24, %c0_25], %41 {strides = array<i32>} : memref<16x384xbf16, #tpu.memory_space<vmem>>, vector<16x384xbf16>,
    } else {
    }
    return
  }
  func.func @transform_0(%arg0: i32, %arg1: i32) -> (i32, i32) {
    %c0_i32 = arith.constant 0 : i32
    %c0_i32_0 = arith.constant 0 : i32
    return %arg0, %c0_i32 : i32, i32
  }
  func.func @transform_1(%arg0: i32, %arg1: i32) -> (i32, i32) {
    %c0_i32 = arith.constant 0 : i32
    %c0_i32_0 = arith.constant 0 : i32
    return %c0_i32, %arg1 : i32, i32
  }
  func.func @transform_2(%arg0: i32, %arg1: i32) -> (i32, i32) {
    %c0_i32 = arith.constant 0 : i32
    %c0_i32_0 = arith.constant 0 : i32
    return %c0_i32, %arg1 : i32, i32
  }
  func.func @transform_3(%arg0: i32, %arg1: i32) -> (i32, i32) {
    %c0_i32 = arith.constant 0 : i32
    %c0_i32_0 = arith.constant 0 : i32
    return %arg0, %c0_i32 : i32, i32
  }
}

</mosaic_0001>

<llo_original>
// kernel: mlm_head_padded.1
$region0: #{mlm_head_padded.1}
  #allocation0 [shape = 'u32[]', space=smem, size = 0x4, offset = 0x4, fixed_abs, tag = 'smem constant byte address 0x4 - core index']
  #allocation1 [shape = 'u32[144,128]{1,0:T(1,128)}', space=vmem, size = 0x12000, scoped, tag = 'internal scratch']
  #allocation2 [shape = 'f32[16,1]{1,0:T(8,128)}', space=vmem, size = 0x2000, scoped, tag = 'scratch operand']
  #allocation3 [shape = 'f32[16,1]{1,0:T(8,128)}', space=vmem, size = 0x2000, scoped, tag = 'scratch operand']
  %s0 = inlined_call_operand.vmem [shape: bf16[16,32], index: 0, kind: input, shape index: {}]
  %s1 = inlined_call_operand.hbm [shape: bf16[32,384], index: 1, kind: input, shape index: {}]
  %s2 = inlined_call_operand.vmem [shape: f32[1,384], index: 2, kind: input, shape index: {}]
  %s3 = inlined_call_operand.hbm [shape: bf16[16,384], index: 3, kind: output, shape index: {}]
  %s4 = sld [smem:[#allocation0]]
  $region57: #{mlm_head_padded.1} parent=0
    _
  %s6 = ssub.s32 1, %s4
  %s7 = scalar_select 0, %s6, %s4
  $region1: #{mlm_head_padded.1} parent=0
    #allocation4 [shape = 'u8[16384]{0}', space=vmem, size = 0x4000, scoped, tag = 'input window, operand 1']
    #allocation5 [shape = 's32[2]{0}', space=sflag, size = 0x8, scoped, tag = 'scoped memory for mlm_head_padded.1']
    #allocation6 [shape = 's32[2]{0}', space=sflag, size = 0x8, scoped, tag = 'scoped memory for mlm_head_padded.1']
    #allocation7 [shape = 'u8[12288]{0}', space=vmem, size = 0x3000, scoped, tag = 'output window, operand 0, single buffered']
    %8 = vsyncpa [#allocation5], 0
    %s9 = scalar_lea.sflag [#allocation5], 1
    %10 = vsyncpa %s9, 0
    %11 = vsyncpa [#allocation6], 0
    loop: start=0, step=1, limit=5
    $region2: #{mlm_head_padded.1} parent=1 // loop_pre_header
      _
    $region3: #{mlm_head_padded.1} parent=1 // loop_header
      %s13 = sphi 0, %s17
      %p14 = scmp.ge.s32.totalorder %s13, 5
      %s20 = sphi 0, %s32
      %s21 = sphi 0, %s28
      %s22 = sphi 0, %s20
      %s23 = sphi 0, %s21
      %s24 = sphi 0, %s22
      %s25 = sphi 0, %s23
      %s35 = sphi 0, %s37
      %s38 = sphi 0, %s35
      %s39 = sphi 0, %s38
      %s55 = sphi 0, %s39
      %s61 = sphi 0, %s63
      %s64 = sphi 0, %s61
      %s65 = sphi 0, %s64
      %s81 = sphi 0, %s65
      %s87 = sphi 0, %s89
      %s90 = sphi 0, %s87
      %s91 = sphi 0, %s90
      %s107 = sphi 0, %s91
      %s113 = sphi 0, %s115
      %s116 = sphi 0, %s113
      %s117 = sphi 0, %s116
      %s133 = sphi 0, %s117
    $region4: #{mlm_head_padded.1} parent=1 // loop_header_branch
      %16 = sbr.rel (%p14) target = $region8
    $region5: #{mlm_head_padded.1} parent=1 // loop_body
      %s18 = ssub.s32 %s13, 1
      %s19 = ssub.s32 %s13, 2
      %s26 = sadd.s32 1, %s21
      %p27 = scmp.ge.s32.totalorder %s26, 3
      %s28 = scalar_select %p27, 0, %s26
      %s29 = sadd.s32 1, %s20
      %s30 = scalar_select %p27, %s29, %s20
      %p31 = scmp.ge.s32.totalorder %s30, 1
      %s32 = scalar_select %p31, 0, %s30
      %s33 = ssub.s32 %s20, %s32
      %p34 = scmp.eq.s32.totalorder %s33, 0
      %s36 = sadd.s32 %s35, 1
      %s37 = scalar_select %p34, %s35, %s36
      %p40 = pneg %p34
      %p41 = scmp.eq.s32.totalorder %s13, 2
      %p42 = por %p40, %p41
      %p43 = scmp.ne.s32.totalorder %s35, %s38
      %p44 = scmp.eq.s32.totalorder %s13, 0
      %p45 = por %p43, %p44
      %p46 = scmp.ne.s32.totalorder %s35, %s38
      %p47 = scmp.eq.s32.totalorder %s18, 2
      %p48 = por %p46, %p47
      %p49 = scmp.ne.s32.totalorder %s38, %s39
      %p50 = scmp.eq.s32.totalorder %s18, 0
      %p51 = por %p49, %p50
      %p52 = scmp.ne.s32.totalorder %s38, %s39
      %p53 = scmp.eq.s32.totalorder %s19, 2
      %p54 = por %p52, %p53
      %p56 = scmp.ne.s32.totalorder %s39, %s55
      %p57 = scmp.eq.s32.totalorder %s19, 0
      %p58 = por %p56, %p57
      %s59 = ssub.s32 %s21, %s28
      %p60 = scmp.eq.s32.totalorder %s59, 0
      %s62 = sadd.s32 %s61, 1
      %s63 = scalar_select %p60, %s61, %s62
      %p66 = pneg %p60
      %p67 = scmp.eq.s32.totalorder %s13, 2
      %p68 = por %p66, %p67
      %p69 = scmp.ne.s32.totalorder %s61, %s64
      %p70 = scmp.eq.s32.totalorder %s13, 0
      %p71 = por %p69, %p70
      %p72 = scmp.ne.s32.totalorder %s61, %s64
      %p73 = scmp.eq.s32.totalorder %s18, 2
      %p74 = por %p72, %p73
      %p75 = scmp.ne.s32.totalorder %s64, %s65
      %p76 = scmp.eq.s32.totalorder %s18, 0
      %p77 = por %p75, %p76
      %p78 = scmp.ne.s32.totalorder %s64, %s65
      %p79 = scmp.eq.s32.totalorder %s19, 2
      %p80 = por %p78, %p79
      %p82 = scmp.ne.s32.totalorder %s65, %s81
      %p83 = scmp.eq.s32.totalorder %s19, 0
      %p84 = por %p82, %p83
      %s85 = ssub.s32 %s21, %s28
      %p86 = scmp.eq.s32.totalorder %s85, 0
      %s88 = sadd.s32 %s87, 1
      %s89 = scalar_select %p86, %s87, %s88
      %p92 = pneg %p86
      %p93 = scmp.eq.s32.totalorder %s13, 2
      %p94 = por %p92, %p93
      %p95 = scmp.ne.s32.totalorder %s87, %s90
      %p96 = scmp.eq.s32.totalorder %s13, 0
      %p97 = por %p95, %p96
      %p98 = scmp.ne.s32.totalorder %s87, %s90
      %p99 = scmp.eq.s32.totalorder %s18, 2
      %p100 = por %p98, %p99
      %p101 = scmp.ne.s32.totalorder %s90, %s91
      %p102 = scmp.eq.s32.totalorder %s18, 0
      %p103 = por %p101, %p102
      %p104 = scmp.ne.s32.totalorder %s90, %s91
      %p105 = scmp.eq.s32.totalorder %s19, 2
      %p106 = por %p104, %p105
      %p108 = scmp.ne.s32.totalorder %s91, %s107
      %p109 = scmp.eq.s32.totalorder %s19, 0
      %p110 = por %p108, %p109
      %s111 = ssub.s32 %s20, %s32
      %p112 = scmp.eq.s32.totalorder %s111, 0
      %s114 = sadd.s32 %s113, 1
      %s115 = scalar_select %p112, %s113, %s114
      %p118 = pneg %p112
      %p119 = scmp.eq.s32.totalorder %s13, 2
      %p120 = por %p118, %p119
      %p121 = scmp.ne.s32.totalorder %s113, %s116
      %p122 = scmp.eq.s32.totalorder %s13, 0
      %p123 = por %p121, %p122
      %p124 = scmp.ne.s32.totalorder %s113, %s116
      %p125 = scmp.eq.s32.totalorder %s18, 2
      %p126 = por %p124, %p125
      %p127 = scmp.ne.s32.totalorder %s116, %s117
      %p128 = scmp.eq.s32.totalorder %s18, 0
      %p129 = por %p127, %p128
      %p130 = scmp.ne.s32.totalorder %s116, %s117
      %p131 = scmp.eq.s32.totalorder %s19, 2
      %p132 = por %p130, %p131
      %p134 = scmp.ne.s32.totalorder %s117, %s133
      %p135 = scmp.eq.s32.totalorder %s19, 0
      %p136 = por %p134, %p135
      %p137 = scmp.le.s32.totalorder 1, %s13
      %p138 = scmp.lt.s32.totalorder %s13, 4
      %p139 = pnand %p137, %p138
      %p140 = pneg %p139
      // Predicated region
      $region9: #{mlm_head_padded.1} parent=5 // pred_check
        _
      $region10: #{mlm_head_padded.1} parent=5 // pred_check_branch
        %142 = sbr.rel (%p139) target = $region12
      $region11: #{mlm_head_padded.1} parent=5 // pred_region
        %s143 = ssub.s32 %s13, 1
        // Predicated region
        $region13: #{mlm_head_padded.1} parent=11 // pred_check
          %p144 = pneg %p51
        $region14: #{mlm_head_padded.1} parent=11 // pred_check_branch
          %146 = sbr.rel (%p144) target = $region16
        $region15: #{mlm_head_padded.1} parent=11 // pred_region
          %s147 = smul.u32 2, %s22
          %p148 = scmp.lt.s32.totalorder %s147, 1
          %s149 = scalar_select %p148, %s147, 1
          %s150 = smul.addr %s149, 4
          %s151 = scalar_lea.vmem %s0, %s150
          %s152 = smul.u32 2, %s22
        $region16: #{mlm_head_padded.1} parent=11 // pred_fallthru
          _
      $region12: #{mlm_head_padded.1} parent=5 // pred_fallthru
        _
      %p153 = scmp.lt.s32.totalorder %s13, 3
      // Predicated region
      $region17: #{mlm_head_padded.1} parent=5 // pred_check
        %p154 = pneg %p153
      $region18: #{mlm_head_padded.1} parent=5 // pred_check_branch
        %156 = sbr.rel (%p154) target = $region20
      $region19: #{mlm_head_padded.1} parent=5 // pred_region
        // Predicated region
        $region21: #{mlm_head_padded.1} parent=19 // pred_check
          %p157 = pneg %p71
        $region22: #{mlm_head_padded.1} parent=19 // pred_check_branch
          %159 = sbr.rel (%p157) target = $region24
        $region23: #{mlm_head_padded.1} parent=19 // pred_region
          %s160 = sand.u32 %s61, 1
          %s161 = scalar_lea.sflag [#allocation5], %s160
          %s162 = sand.u32 %s61, 1
          %s163 = smul.addr %s162, 16
          %s164 = scalar_lea.vmem [#allocation4], %s163
          %s166 = ssub.s32 256, 256
          %167 = vsyncadd %s161, %s166
          %s168 = smul.addr %s21, 64
          %s169 = scalar_lea.hbm %s1, %s168
          %s170 = sshll.u32 %s164, 4
          %s171 = int_to_ptr.vmem [resolvable:$true] %s170
          %176 = dma.hbm_to_vmem [thread:$0]  %s169, 256, %s171, %s161, 192, 64, 4
        $region24: #{mlm_head_padded.1} parent=19 // pred_fallthru
          _
        // Predicated region
        $region25: #{mlm_head_padded.1} parent=19 // pred_check
          %p177 = pneg %p97
        $region26: #{mlm_head_padded.1} parent=19 // pred_check_branch
          %179 = sbr.rel (%p177) target = $region28
        $region27: #{mlm_head_padded.1} parent=19 // pred_region
          %p180 = scmp.lt.s32.totalorder %s21, 2
          %s181 = scalar_select %p180, %s21, 2
          %s182 = scalar_lea.vmem %s2, %s181
        $region28: #{mlm_head_padded.1} parent=19 // pred_fallthru
          _
      $region20: #{mlm_head_padded.1} parent=5 // pred_fallthru
        _
      %p183 = scmp.le.s32.totalorder 1, %s13
      %p184 = scmp.lt.s32.totalorder %s13, 4
      %p185 = pnand %p183, %p184
      %p186 = pneg %p185
      // Predicated region
      $region29: #{mlm_head_padded.1} parent=5 // pred_check
        _
      $region30: #{mlm_head_padded.1} parent=5 // pred_check_branch
        %188 = sbr.rel (%p185) target = $region32
      $region31: #{mlm_head_padded.1} parent=5 // pred_region
        %s189 = ssub.s32 %s13, 1
        %s190 = sand.u32 %s64, 1
        %s191 = scalar_lea.sflag [#allocation5], %s190
        %s192 = sand.u32 %s64, 1
        %s193 = smul.addr %s192, 16
        %s194 = scalar_lea.vmem [#allocation4], %s193
        // Predicated region
        $region33: #{mlm_head_padded.1} parent=31 // pred_check
          %p195 = pneg %p77
        $region34: #{mlm_head_padded.1} parent=31 // pred_check_branch
          %197 = sbr.rel (%p195) target = $region36
        $region35: #{mlm_head_padded.1} parent=31 // pred_region
          %198 = dma.done %s191, 256
        $region36: #{mlm_head_padded.1} parent=31 // pred_fallthru
          _
        %s199 = smul.u32 2, %s22
        %p200 = scmp.lt.s32.totalorder %s199, 1
        %s201 = scalar_select %p200, %s199, 1
        %s202 = smul.addr %s201, 4
        %s203 = scalar_lea.vmem %s0, %s202
        %p204 = pneg %p51
        %p205 = pneg %p48
        %s206 = sand.u32 %s64, 1
        %s207 = scalar_lea.sflag [#allocation5], %s206
        %s208 = sand.u32 %s64, 1
        %s209 = smul.addr %s208, 16
        %s210 = scalar_lea.vmem [#allocation4], %s209
        %p211 = pneg %p77
        %p212 = pneg %p74
        %p213 = scmp.lt.s32.totalorder %s23, 2
        %s214 = scalar_select %p213, %s23, 2
        %s215 = scalar_lea.vmem %s2, %s214
        %p216 = pneg %p103
        %p217 = pneg %p100
        %p218 = pneg %p129
        %p219 = pneg %p126
        %s220 = smul.u32 2, %s22
        %p221 = scmp.lt.s32.totalorder %s220, 1
        %s222 = scalar_select %p221, %s220, 1
        %s223 = smul.addr %s222, 4
        %s224 = scalar_lea.vmem %s0, %s223
        %s225 = smul.u32 2, %s22
        %p226 = scmp.lt.s32.totalorder %s23, 2
        %s227 = scalar_select %p226, %s23, 2
        %s228 = scalar_lea.vmem %s2, %s227
        %s229 = smul.u32 2, %s22
        %p231 = scmp.eq.s32.totalorder %s23, 0
        // Predicated region
        $region37: #{mlm_head_padded.1} parent=31 // pred_check
          %p232 = pneg %p231
        $region38: #{mlm_head_padded.1} parent=31 // pred_check_branch
          %234 = sbr.rel (%p232) target = $region40
        $region39: #{mlm_head_padded.1} parent=31 // pred_region
          %vm235 = vcmask 7168
          %236 = vst.msk [vmem:[#allocation2] sm:$0xff] %vm235, -inf
          %237 = vst.msk [vmem:[#allocation2 + $0x8] sm:$0xff] %vm235, -inf
          %238 = vst.msk [vmem:[#allocation3] sm:$0xff] %vm235, 0.0
          %239 = vst.msk [vmem:[#allocation3 + $0x8] sm:$0xff] %vm235, 0.0
        $region40: #{mlm_head_padded.1} parent=31 // pred_fallthru
          _
        %v240 = vld [vmem:[%s224] sm:$0xf]
        %v241 = vld [vmem:[%s224 + $0x4] sm:$0xf]
        %v242 = vld [vmem:[%s194] sm:$0xf]
        %v243 = vld [vmem:[%s194 + $0x4] sm:$0xf]
        %v244 = vld [vmem:[%s194 + $0x8] sm:$0xf]
        %v245 = vld [vmem:[%s194 + $0xc] sm:$0xf]
        %v246 = vld [vmem:[%s228] sm:$0x1]
        %v248 = vlaneseq
        %v249 = vshrl.u32 %v248, 7
        %v250 = vsub.s32 0, %v249
        %v251 = vrot.slane %v246, %v250
        %v255 = vunpack.c.l.b16 %v240
        %v256 = vunpack.c.l.b16 %v241
        %v257 = vpack.c.b16 %v256, %v255
        %v262 = vunpack.c.l.b16 %v242
        %v263 = vunpack.c.l.b16 %v243
        %v264 = vunpack.c.l.b16 %v244
        %v265 = vunpack.c.l.b16 %v245
        %v266 = vpack.c.b16 %v263, %v262
        %v267 = vpack.c.b16 %v265, %v264
        %vm270 = vcmask 261120
        %v272 = vsel %vm270, %v257, 0
        %274 = vmatprep.subr.bf16.mxu0 0
        %275 = vmatpush1.bf16.msra.mxu0 0
        %276 = vmatprep.subr.bf16.mxu0 0
        %277 = vmatpush1.bf16.msra.mxu0 0
        %278 = vmatprep.subr.bf16.mxu0 0
        %279 = vmatpush1.bf16.msra.mxu0 0
        %280 = vmatprep.subr.bf16.mxu0 0
        %281 = vmatpush1.bf16.msra.mxu0 0
        %282 = vmatprep.subr.bf16.mxu0 0
        %283 = vmatpush1.bf16.msra.mxu0 0
        %284 = vmatprep.subr.bf16.mxu0 0
        %285 = vmatpush1.bf16.msra.mxu0 0
        %286 = vmatprep.subr.bf16.mxu0 0
        %287 = vmatpush1.bf16.msra.mxu0 %v267
        %288 = vmatprep.subr.bf16.mxu0 0
        %289 = vmatpush1.bf16.msra.mxu0 %v266
        %290 = vmatprep.subr.bf16.mxu0 0
        %291 = vmatpush2.bf16.msra.mxu0 0
        %292 = vmatprep.subr.bf16.mxu0 0
        %293 = vmatpush2.bf16.msra.mxu0 0
        %294 = vmatprep.subr.bf16.mxu0 0
        %295 = vmatpush2.bf16.msra.mxu0 0
        %296 = vmatprep.subr.bf16.mxu0 0
        %297 = vmatpush2.bf16.msra.mxu0 0
        %298 = vmatprep.subr.bf16.mxu0 0
        %299 = vmatpush2.bf16.msra.mxu0 0
        %300 = vmatprep.subr.bf16.mxu0 0
        %301 = vmatpush2.bf16.msra.mxu0 0
        %302 = vmatprep.subr.bf16.mxu0 0
        %303 = vmatpush2.bf16.msra.mxu0 0
        %304 = vmatprep.subr.bf16.mxu0 0
        %305 = vmatpush2.bf16.msra.mxu0 0
        %306 = vmatprep.mubr.bf16.mxu0 0
        %307 = vmatmul.mubr.bf16.gmra.mxu0 %v272
        %v308 = vpop.f32.mrf.mxu0
        %v309 = vadd.f32 %v251, %v308
        %v310 = vpop.f32.mrf.mxu0
        %v311 = vpop.f32.mrf.mxu0
        %v312 = vadd.f32 %v251, %v311
        %v313 = vpop.f32.mrf.mxu0
        %314 = vdwg.mxu0
        %v315 = vld [vmem:[#allocation2] sm:$0xff]
        %v316 = vld [vmem:[#allocation2 + $0x8] sm:$0xff]
        %317 = vmax.xlane.f32.xlu0 %v309
        %v318 = vpop.xlane.xlu0 %317
        %319 = vmax.xlane.f32.xlu0 %v312
        %v320 = vpop.xlane.xlu0 %319
        %v321 = vmax.f32 %v315, %v318
        %v322 = vmax.f32 %v316, %v320
        %v323 = vsub.f32 %v315, %v321
        %v324 = vsub.f32 %v316, %v322
        %v325 = vmul.f32 %v323, 1.442695
        %v326 = vpow.pop %v325
        %v327 = vmul.f32 %v324, 1.442695
        %v328 = vpow.pop %v327
        %v329 = vld [vmem:[#allocation3] sm:$0xff]
        %v330 = vld [vmem:[#allocation3 + $0x8] sm:$0xff]
        %v331 = vmul.f32 %v326, %v329
        %v332 = vmul.f32 %v328, %v330
        %334 = vset.pattern.permute.xlu0 0
        %335 = vperm.xlu0 %334, %v321
        %v336 = vpop.permute.xlu0 %335
        %339 = vset.pattern.permute.xlu0 0
        %340 = vperm.xlu0 %339, %v322
        %v341 = vpop.permute.xlu0 %340
        %v343 = vsub.f32 %v309, %v336
        %v344 = vsub.f32 %v312, %v341
        %v345 = vmul.f32 %v343, 1.442695
        %v346 = vpow.pop %v345
        %v347 = vmul.f32 %v344, 1.442695
        %v348 = vpow.pop %v347
        %349 = vadd.xlane.f32.xlu0 %v346
        %v350 = vpop.xlane.xlu0 %349
        %351 = vadd.xlane.f32.xlu0 %v348
        %v352 = vpop.xlane.xlu0 %351
        %v353 = vadd.f32 %v331, %v350
        %v354 = vadd.f32 %v332, %v352
        %vm355 = vcmask 7168
        %356 = vst.msk [vmem:[#allocation3] sm:$0xff] %vm355, %v353
        %357 = vst.msk [vmem:[#allocation3 + $0x8] sm:$0xff] %vm355, %v354
        %358 = vst.msk [vmem:[#allocation2] sm:$0xff] %vm355, %v321
        %359 = vst.msk [vmem:[#allocation2 + $0x8] sm:$0xff] %vm355, %v322
        %s360 = smul.u32 %s23, 128
        %v361 = vpack.c.bf16 %v312, %v309
        %v363 = vunpack.c.l.b16 %v361
        %v364 = vunpack.c.h.b16 %v361
        %v365 = vpack.c.b16 %v363, %v363
        %v366 = vpack.c.b16 %v364, %v364
        %s369 = sshra.s32 %s360, 7
        %s370 = sand.u32 %s360, 127
        %s371 = smul.addr %s369, 4
        %s372 = scalar_lea.vmem [#allocation7], %s371
        %373 = vst [vmem:[%s372] sm:$0xf] %v365
        %374 = vst [vmem:[%s372 + $0xc] sm:$0xf] %v366
        %p375 = scmp.eq.s32.totalorder %s23, 2
        // Predicated region
        $region41: #{mlm_head_padded.1} parent=31 // pred_check
          %p376 = pneg %p375
        $region42: #{mlm_head_padded.1} parent=31 // pred_check_branch
          %378 = sbr.rel (%p376) target = $region44
        $region43: #{mlm_head_padded.1} parent=31 // pred_region
          %v379 = vld [vmem:[#allocation2] sm:$0xff]
          %v380 = vld [vmem:[#allocation2 + $0x8] sm:$0xff]
          %v381 = vld [vmem:[#allocation3] sm:$0xff]
          %v382 = vld [vmem:[#allocation3 + $0x8] sm:$0xff]
          %v383 = vlog2.pop %v381
          %v384 = vmul.f32 %v383, 0.6931472
          %v385 = vlog2.pop %v382
          %v386 = vmul.f32 %v385, 0.6931472
          %v387 = vadd.f32 %v379, %v384
          %v388 = vadd.f32 %v380, %v386
          %v389 = vld [vmem:[#allocation7] sm:$0xff]
          %v390 = vld [vmem:[#allocation7 + $0x8] sm:$0xf]
          %v391 = vld [vmem:[#allocation7 + $0xc] sm:$0xff]
          %v392 = vld [vmem:[#allocation7 + $0x14] sm:$0xf]
          %v393 = vunpack.c.l.bf16 %v389
          %v394 = vunpack.c.h.bf16 %v389
          %v395 = vunpack.c.l.bf16 %v390
          %v396 = vunpack.c.l.bf16 %v391
          %v397 = vunpack.c.h.bf16 %v391
          %v398 = vunpack.c.l.bf16 %v392
          %400 = vset.pattern.permute.xlu0 0
          %401 = vperm.xlu0 %400, %v387
          %v402 = vpop.permute.xlu0 %401
          %405 = vset.pattern.permute.xlu0 0
          %406 = vperm.xlu0 %405, %v388
          %v407 = vpop.permute.xlu0 %406
          %v409 = vsub.f32 %v393, %v402
          %v410 = vsub.f32 %v394, %v402
          %v411 = vsub.f32 %v395, %v402
          %v412 = vsub.f32 %v396, %v407
          %v413 = vsub.f32 %v397, %v407
          %v414 = vsub.f32 %v398, %v407
          %v415 = vpack.c.bf16 %v412, %v409
          %v416 = vpack.c.bf16 %v413, %v410
          %v417 = vpack.c.bf16 %v414, %v411
          %v421 = vunpack.c.l.b16 %v415
          %v422 = vunpack.c.l.b16 %v416
          %v423 = vunpack.c.l.b16 %v417
          %v424 = vunpack.c.h.b16 %v415
          %v425 = vunpack.c.h.b16 %v416
          %v426 = vunpack.c.h.b16 %v417
          %v427 = vpack.c.b16 %v422, %v421
          %v428 = vpack.c.b16 %v423, %v423
          %v429 = vpack.c.b16 %v425, %v424
          %v430 = vpack.c.b16 %v426, %v426
          %435 = vst [vmem:[#allocation7] sm:$0xff] %v427
          %436 = vst [vmem:[#allocation7 + $0x8] sm:$0xf] %v428
          %437 = vst [vmem:[#allocation7 + $0xc] sm:$0xff] %v429
          %438 = vst [vmem:[#allocation7 + $0x14] sm:$0xf] %v430
        $region44: #{mlm_head_padded.1} parent=31 // pred_fallthru
          _
        // Predicated region
        $region45: #{mlm_head_padded.1} parent=31 // pred_check
          %p439 = pneg %p126
        $region46: #{mlm_head_padded.1} parent=31 // pred_check_branch
          %441 = sbr.rel (%p439) target = $region48
        $region47: #{mlm_head_padded.1} parent=31 // pred_region
          %s442 = smul.u32 2, %s22
          %s444 = ssub.s32 384, 384
          %445 = vsyncadd [#allocation6], %s444
          %s446 = smul.addr %s442, 3
          %s447 = smul.addr %s446, 64
          %s448 = scalar_lea.hbm %s3, %s447
          %s449 = sshll.u32 [#allocation7], 4
          %s450 = int_to_ptr.vmem [resolvable:$true] %s449
          %455 = dma.vmem_to_hbm [thread:$0]  %s450, 384, %s448, [#allocation6], 192, 192, 12
        $region48: #{mlm_head_padded.1} parent=31 // pred_fallthru
          _
        // Predicated region
        $region49: #{mlm_head_padded.1} parent=31 // pred_check
          %p456 = pneg %p126
        $region50: #{mlm_head_padded.1} parent=31 // pred_check_branch
          %458 = sbr.rel (%p456) target = $region52
        $region51: #{mlm_head_padded.1} parent=31 // pred_region
          %459 = dma.done [#allocation6], 384
        $region52: #{mlm_head_padded.1} parent=31 // pred_fallthru
          _
      $region32: #{mlm_head_padded.1} parent=5 // pred_fallthru
        _
      %p460 = scmp.le.s32.totalorder 2, %s13
      // Predicated region
      $region53: #{mlm_head_padded.1} parent=5 // pred_check
        %p461 = pneg %p460
      $region54: #{mlm_head_padded.1} parent=5 // pred_check_branch
        %463 = sbr.rel (%p461) target = $region56
      $region55: #{mlm_head_padded.1} parent=5 // pred_region
        %s464 = ssub.s32 %s13, 2
      $region56: #{mlm_head_padded.1} parent=5 // pred_fallthru
        _
    $region6: #{mlm_head_padded.1} parent=1 // loop_footer
      %s17 = sadd.s32 1, %s13
    $region7: #{mlm_head_padded.1} parent=1 // loop_footer_branch
      %12 = sbr.rel target = $region3
    $region8: #{mlm_head_padded.1} parent=1 // loop_exit
      _
    %465 = vsyncpa [#allocation5], 1
    %s466 = scalar_lea.sflag [#allocation5], 1
    %467 = vsyncpa %s466, 1
    %468 = vsyncpa [#allocation6], 1
    %s469 = scalar_lea.sflag [#allocation6], 1
    %470 = vsyncpa %s469, 1

</llo_original>
